<compile_context>
chip_gen: v7x
topology: tpu7x:2x2x1
jax: 0.10.0
libtpu: 0.0.40
codegen_flags: <defaults>
</compile_context>

<pallas_src>
import numpy as np
import jax
import jax.numpy as jnp
from jax.experimental import pallas as pl
from jax.experimental.pallas import tpu as pltpu


def _round_up(x, m):
    return ((x + m - 1) // m) * m


# ---------------------------------------------------------------------------
# forward kernel:  xui = sum(gu * gi, axis=embedding)
#   inputs arrive transposed: (K, B) so the batch lives on the lane axis.
# ---------------------------------------------------------------------------

def _forward_kernel(gu_ref, gi_ref, out_ref):
    # gu/gi blocks: (K, TB) f32, batch on lanes.  Elementwise product on the
    # VPU, sublane reduction over K; the (1, TB) result is lane-dense so the
    # store is an unmasked vst.  Exact f32 on the loss path.
    out_ref[...] = jnp.sum(gu_ref[...] * gi_ref[...], axis=0, keepdims=True)


def _pick_forward_tile(B, max_tb=1024):
    """Lane-dense (multiple-of-128) batch tile with minimal padding waste.

    For B > 128 we aim for at least two grid points so v7x's second
    TensorCore gets work via dimension_semantics=("parallel",).
    """
    if B <= 128:
        return 128
    half = _round_up((B + 1) // 2, 128)
    return min(half, max_tb)


def dgcf_forward(gu, gi):
    """Pallas DGCFModel.forward: per-row dot product, returns (B,) scores."""
    # torch.squeeze-equivalent that is safe for B == 1: collapse every axis
    # except the embedding axis, then transpose to (K, B) for lane-dense
    # kernel blocks (single XLA transpose in the wrapper).
    gu = jnp.asarray(gu, jnp.float32).reshape(-1, gu.shape[-1])
    gi = jnp.asarray(gi, jnp.float32).reshape(-1, gi.shape[-1])
    B, K = gu.shape
    gu_t = gu.T                                  # (K, B)
    gi_t = gi.T                                  # (K, B)

    tb = _pick_forward_tile(B)
    b_pad = _round_up(B, tb)
    if b_pad != B:
        gu_t = jnp.pad(gu_t, ((0, 0), (0, b_pad - B)))
        gi_t = jnp.pad(gi_t, ((0, 0), (0, b_pad - B)))
    nb = b_pad // tb

    block_bytes = 2 * K * tb * 4 + tb * 4        # two input blocks + one output row
    out = pl.pallas_call(
        _forward_kernel,
        out_shape=jax.ShapeDtypeStruct((1, b_pad), jnp.float32),
        grid=(nb,),
        in_specs=[pl.BlockSpec((K, tb), lambda i: (0, i)),
                  pl.BlockSpec((K, tb), lambda i: (0, i))],
        out_specs=pl.BlockSpec((1, tb), lambda i: (0, i)),
        compiler_params=pltpu.CompilerParams(
            dimension_semantics=("parallel",),
            vmem_limit_bytes=max(4 * block_bytes, 8 * 1024 * 1024)),
    )(gu_t, gi_t)
    return out.reshape(b_pad)[:B]


# ---------------------------------------------------------------------------
# predict kernel:  scores = gu @ gi.T
#   bf16 in, f32 MXU accumulate, bf16 out (output write dominates HBM traffic)
# ---------------------------------------------------------------------------

def _predict_kernel(gu_ref, gi_ref, out_ref):
    # gu: (TM, K) bf16, gi: (TN, K) bf16.  Contract the K axes directly
    # (trans-B form) so gi is consumed in its stored layout — no XLU transpose.
    acc = jax.lax.dot_general(
        gu_ref[...], gi_ref[...],
        dimension_numbers=(((1,), (1,)), ((), ())),
        preferred_element_type=jnp.float32)
    out_ref[...] = acc.astype(out_ref.dtype)


def dgcf_predict(gu, gi, *, block_u=512, block_i=1024):
    """Pallas DGCFModel.predict: full (U, I) score matrix (bf16 scores)."""
    gu = jnp.asarray(gu, jnp.bfloat16)
    gi = jnp.asarray(gi, jnp.bfloat16)
    U, K = gu.shape
    I, _ = gi.shape

    # Lane-dense tn (multiple of 128); K=32 stays a single block so there is
    # no K grid axis or accumulator.  The kernel is HBM-store-bound, so the
    # tiles are sized for bandwidth, not FLOPs (MXU underfill is irrelevant).
    tm = min(block_u, _round_up(U, 8))
    tn = min(block_i, _round_up(I, 128))
    u_pad = _round_up(U, tm)
    i_pad = _round_up(I, tn)
    if u_pad != U:
        gu = jnp.pad(gu, ((0, u_pad - U), (0, 0)))
    if i_pad != I:
        gi = jnp.pad(gi, ((0, i_pad - I), (0, 0)))

    # Per-block VMEM (bf16 in, bf16 out); double-buffered by Pallas.  With the
    # default (512, 1024) tiles this is ~1.1 MiB/block -> far below the v7x
    # 32 MiB scoped / 64 MiB physical budget.
    block_bytes = tm * K * 2 + tn * K * 2 + tm * tn * 2
    vmem_limit = min(max(6 * block_bytes, 16 * 1024 * 1024), 48 * 1024 * 1024)

    out = pl.pallas_call(
        _predict_kernel,
        out_shape=jax.ShapeDtypeStruct((u_pad, i_pad), jnp.bfloat16),
        # Item axis innermost: the gu block index (i, 0) is constant across
        # the inner loop, so the gu tile stays resident (no re-DMA).
        grid=(u_pad // tm, i_pad // tn),
        in_specs=[pl.BlockSpec((tm, K), lambda i, j: (i, 0)),
                  pl.BlockSpec((tn, K), lambda i, j: (j, 0))],
        out_specs=pl.BlockSpec((tm, tn), lambda i, j: (i, j)),
        compiler_params=pltpu.CompilerParams(
            dimension_semantics=("parallel", "parallel"),
            vmem_limit_bytes=vmem_limit),
    )(gu, gi)
    return out[:U, :I]


# ---------------------------------------------------------------------------
# Plain-JAX glue: DGCF embedding propagation (segment_sum instead of dense A)
# ---------------------------------------------------------------------------

def propagate_embeddings(Gu, Gi, edge_index, num_users, num_items,
                         intents, n_layers, routing_iterations):
    num_node = num_users + num_items
    heads = jnp.asarray(edge_index[0], dtype=jnp.int32)
    tails = jnp.asarray(edge_index[1], dtype=jnp.int32)

    embed_k = Gu.shape[1]
    chunk = embed_k // intents

    ego = jnp.concatenate([Gu, Gi], axis=0)
    all_embeddings = [ego]
    A_values = jnp.ones((heads.shape[0], intents), jnp.float32)

    def l2norm(x):
        n = jnp.sqrt(jnp.sum(x * x, axis=1, keepdims=True))
        return x / jnp.maximum(n, 1e-12)

    for _layer in range(n_layers):
        ego_layer = [ego[:, i * chunk:(i + 1) * chunk] for i in range(intents)]
        layer_embeddings = []
        for t in range(routing_iterations):
            iter_embeddings = []
            A_iter = []
            norm_A = jax.nn.softmax(A_values, axis=1)
            for i in range(intents):
                tp = norm_A[:, i:i + 1]                                  # (E, 1)
                d = jax.ops.segment_sum(tp, heads, num_segments=num_node)
                d = jnp.clip(d, 1e-8)
                d = 1.0 / jnp.sqrt(d)
                edge_weight = tp * d[heads] * d[tails]                   # (E, 1)
                edge_val = ego_layer[i][tails] * edge_weight             # (E, chunk)
                factor_emb = jax.ops.segment_sum(edge_val, heads,
                                                 num_segments=num_node)  # (N, chunk)
                iter_embeddings.append(factor_emb)

                head_f = l2norm(factor_emb[heads])
                tail_f = l2norm(ego_layer[i][tails])
                A_iter.append(jnp.sum(head_f * jnp.tanh(tail_f),
                                      axis=1, keepdims=True))
            if t == routing_iterations - 1:
                layer_embeddings = iter_embeddings
            A_values = A_values + jnp.concatenate(A_iter, axis=1)
        ego = jnp.concatenate(layer_embeddings, axis=1)
        all_embeddings.append(ego)

    all_emb = jnp.mean(jnp.stack(all_embeddings, axis=1), axis=1)
    return all_emb[:num_users], all_emb[num_users:]


# ---------------------------------------------------------------------------
# Main
# ---------------------------------------------------------------------------

if __name__ == "__main__":
    num_users, num_items = 8, 8
    embed_k = 32
    intents = 4
    n_layers = 2
    routing_iterations = 2

    # Synthetic symmetric bipartite edge_index: each user links to 3 items.
    rows, cols = [], []
    for u in range(num_users):
        for j in range(3):
            rows.append(u)
            cols.append(num_users + (u + j) % num_items)
    heads = np.array(rows + cols, dtype=np.int64)
    tails = np.array(cols + rows, dtype=np.int64)
    edge_index = np.stack([heads, tails], axis=0)             # (2, 48)

    # Deterministic xavier-uniform-style init for Gu, Gi.
    key = jax.random.PRNGKey(0)
    ku, ki, kb = jax.random.split(key, 3)
    bound_u = float(np.sqrt(6.0 / (num_users + embed_k)))
    bound_i = float(np.sqrt(6.0 / (num_items + embed_k)))
    Gu = jax.random.uniform(ku, (num_users, embed_k), jnp.float32,
                            -bound_u, bound_u)
    Gi = jax.random.uniform(ki, (num_items, embed_k), jnp.float32,
                            -bound_i, bound_i)

    ua_emb, ia_emb = propagate_embeddings(
        Gu, Gi, edge_index, num_users, num_items,
        intents, n_layers, routing_iterations)

    # A small training-style batch (users, positive items).
    batch = 4
    users = jax.random.randint(kb, (batch,), 0, num_users)
    pos = jax.random.randint(jax.random.fold_in(kb, 1), (batch,), 0, num_items)

    # TODO(synk): the batch gather stays in XLA (it fuses with the transpose);
    # a lane-axis gather is not expressible via BlockSpec, so fusing it into
    # the forward kernel would need a manual per-row DMA gather.
    gu = ua_emb[users]        # (B, embed_k)
    gi = ia_emb[pos]          # (B, embed_k)

    # forward (Pallas kernel, (K, B) lane-dense layout, exact f32)
    xui = jax.block_until_ready(dgcf_forward(gu, gi))

    # predict (Pallas MXU kernel, bf16 in / f32 accumulate / bf16 scores)
    scores = jax.block_until_ready(dgcf_predict(ua_emb, ia_emb))

    # Reference checks.
    xui_ref = jnp.sum(gu * gi, axis=1)                                   # f32
    gu_b = ua_emb.astype(jnp.bfloat16).astype(jnp.float32)               # bf16-rounded ref
    gi_b = ia_emb.astype(jnp.bfloat16).astype(jnp.float32)
    scores_ref = gu_b @ gi_b.T

    assert xui.shape == (batch,)
    assert scores.shape == (num_users, num_items)
    np.testing.assert_allclose(np.asarray(xui), np.asarray(xui_ref),
                               rtol=1e-5, atol=1e-5)
    # bf16 output scores: compare against the f32 reference with bf16-level
    # tolerance (ranking-path numerics, not bit-comparable to torch f32).
    np.testing.assert_allclose(np.asarray(scores, dtype=np.float32),
                               np.asarray(scores_ref),
                               rtol=2e-2, atol=1e-2)

    print("KERNEL_OK")
</pallas_src>

<mosaic_0001>
module attributes {stable_mosaic.version = 11 : i64} {
  func.func @_forward_kernel(%arg0: i32, %arg1: memref<32x128xf32, #tpu.memory_space<vmem>>, %arg2: memref<32x128xf32, #tpu.memory_space<vmem>>, %arg3: memref<1x128xf32, #tpu.memory_space<vmem>>) attributes {dimension_semantics = [#tpu.dimension_semantics<parallel>], iteration_bounds = array<i64: 1>, scalar_prefetch = 0 : i64, scratch_operands = 0 : i64, tpu.core_type = #tpu.core_type<tc>, window_params = [{transform_indices = @transform_0, window_bounds = array<i64: 32, 128>}, {transform_indices = @transform_1, window_bounds = array<i64: 32, 128>}, {transform_indices = @transform_2, window_bounds = array<i64: 1, 128>}]} {
    %c0 = arith.constant 0 : index
    %c0_0 = arith.constant 0 : index
    %0 = vector.load %arg1[%c0, %c0_0] : memref<32x128xf32, #tpu.memory_space<vmem>>, vector<32x128xf32>
    %c0_1 = arith.constant 0 : index
    %c0_2 = arith.constant 0 : index
    %1 = vector.load %arg2[%c0_1, %c0_2] : memref<32x128xf32, #tpu.memory_space<vmem>>, vector<32x128xf32>
    %2 = arith.mulf %0, %1 : vector<32x128xf32>
    %cst = arith.constant dense<0.000000e+00> : vector<128xf32>
    %3 = vector.multi_reduction <add>, %2, %cst [0] : vector<32x128xf32> to vector<128xf32>
    %4 = vector.shape_cast %3 : vector<128xf32> to vector<1x128xf32>
    %c0_3 = arith.constant 0 : index
    %c0_4 = arith.constant 0 : index
    %5 = vector.load %arg3[%c0_3, %c0_4] : memref<1x128xf32, #tpu.memory_space<vmem>>, vector<1x128xf32>
    tpu.vector_store %arg3[%c0_3, %c0_4], %4 {strides = array<i32>} : memref<1x128xf32, #tpu.memory_space<vmem>>, vector<1x128xf32>,
    return
  }
  func.func @transform_0(%arg0: i32) -> (i32, i32) {
    %c0_i32 = arith.constant 0 : i32
    %c0_i32_0 = arith.constant 0 : i32
    return %c0_i32, %arg0 : i32, i32
  }
  func.func @transform_1(%arg0: i32) -> (i32, i32) {
    %c0_i32 = arith.constant 0 : i32
    %c0_i32_0 = arith.constant 0 : i32
    return %c0_i32, %arg0 : i32, i32
  }
  func.func @transform_2(%arg0: i32) -> (i32, i32) {
    %c0_i32 = arith.constant 0 : i32
    %c0_i32_0 = arith.constant 0 : i32
    return %c0_i32, %arg0 : i32, i32
  }
}

</mosaic_0001>

<llo_original>
// kernel: tpu_custom_call.1
$region0: #{tpu_custom_call.1}
  #allocation0 [shape = 'u32[]', space=smem, size = 0x4, offset = 0x4, fixed_abs, tag = 'smem constant byte address 0x4 - core index']
  #allocation1 [shape = 'u32[144,128]{1,0:T(1,128)}', space=vmem, size = 0x12000, scoped, tag = 'internal scratch']
  %s0 = inlined_call_operand.hbm [shape: f32[32,128], index: 0, kind: input, shape index: {}]
  %s1 = inlined_call_operand.hbm [shape: f32[32,128], index: 1, kind: input, shape index: {}]
  %s2 = inlined_call_operand.hbm [shape: f32[1,128], index: 2, kind: output, shape index: {}]
  %s3 = sld [smem:[#allocation0]]
  $region26: #{tpu_custom_call.1} parent=0
    _
  %s5 = ssub.s32 1, %s3
  %s6 = scalar_select 0, %s5, %s3
  $region1: #{tpu_custom_call.1} parent=0
    #allocation2 [shape = 'u8[16384]{0}', space=vmem, size = 0x4000, scoped, tag = 'input window, operand 0, single buffered']
    #allocation3 [shape = 's32[1]{0}', space=sflag, size = 0x4, scoped, tag = 'scoped memory for tpu_custom_call.1']
    #allocation4 [shape = 's32[1]{0}', space=sflag, size = 0x4, scoped, tag = 'scoped memory for tpu_custom_call.1']
    #allocation5 [shape = 'u8[16384]{0}', space=vmem, size = 0x4000, scoped, tag = 'input window, operand 1, single buffered']
    #allocation6 [shape = 's32[1]{0}', space=sflag, size = 0x4, scoped, tag = 'scoped memory for tpu_custom_call.1']
    #allocation7 [shape = 'u8[512]{0}', space=vmem, size = 0x400, scoped, tag = 'output window, operand 0, single buffered']
    %7 = vsyncpa [#allocation3], 0
    %8 = vsyncpa [#allocation6], 0
    %9 = vsyncpa [#allocation4], 0
    // Predicated region
    $region2: #{tpu_custom_call.1} parent=1 // pred_check
      _
    $region3: #{tpu_custom_call.1} parent=1 // pred_check_branch
      %11 = sbr.rel (0) target = $region5
    $region4: #{tpu_custom_call.1} parent=1 // pred_region
      %s13 = ssub.s32 512, 512
      %14 = vsyncadd [#allocation3], %s13
      %s15 = sshll.u32 [#allocation2], 4
      %s16 = int_to_ptr.vmem [resolvable:$true] %s15
      %21 = dma.hbm_to_vmem [thread:$0]  %s0, 512, %s16, [#allocation3], 128, 128, 8
    $region5: #{tpu_custom_call.1} parent=1 // pred_fallthru
      _
    // Predicated region
    $region6: #{tpu_custom_call.1} parent=1 // pred_check
      _
    $region7: #{tpu_custom_call.1} parent=1 // pred_check_branch
      %23 = sbr.rel (0) target = $region9
    $region8: #{tpu_custom_call.1} parent=1 // pred_region
      %s25 = ssub.s32 512, 512
      %26 = vsyncadd [#allocation6], %s25
      %s27 = sshll.u32 [#allocation5], 4
      %s28 = int_to_ptr.vmem [resolvable:$true] %s27
      %33 = dma.hbm_to_vmem [thread:$0]  %s1, 512, %s28, [#allocation6], 128, 128, 8
    $region9: #{tpu_custom_call.1} parent=1 // pred_fallthru
      _
    // Predicated region
    $region10: #{tpu_custom_call.1} parent=1 // pred_check
      _
    $region11: #{tpu_custom_call.1} parent=1 // pred_check_branch
      %35 = sbr.rel (0) target = $region13
    $region12: #{tpu_custom_call.1} parent=1 // pred_region
      %36 = dma.done [#allocation3], 512
    $region13: #{tpu_custom_call.1} parent=1 // pred_fallthru
      _
    // Predicated region
    $region14: #{tpu_custom_call.1} parent=1 // pred_check
      _
    $region15: #{tpu_custom_call.1} parent=1 // pred_check_branch
      %38 = sbr.rel (0) target = $region17
    $region16: #{tpu_custom_call.1} parent=1 // pred_region
      %39 = dma.done [#allocation6], 512
    $region17: #{tpu_custom_call.1} parent=1 // pred_fallthru
      _
    %v40 = vld [vmem:[#allocation2] sm:$0xff]
    %v41 = vld [vmem:[#allocation2 + $0x8] sm:$0xff]
    %v42 = vld [vmem:[#allocation2 + $0x10] sm:$0xff]
    %v43 = vld [vmem:[#allocation2 + $0x18] sm:$0xff]
    %v44 = vld [vmem:[#allocation5] sm:$0xff]
    %v45 = vld [vmem:[#allocation5 + $0x8] sm:$0xff]
    %v46 = vld [vmem:[#allocation5 + $0x10] sm:$0xff]
    %v47 = vld [vmem:[#allocation5 + $0x18] sm:$0xff]
    %v48 = vmul.f32 %v40, %v44
    %v49 = vmul.f32 %v41, %v45
    %v50 = vmul.f32 %v42, %v46
    %v51 = vmul.f32 %v43, %v47
    %v52 = vadd.f32 %v48, %v49
    %v53 = vadd.f32 %v52, %v50
    %v54 = vadd.f32 %v53, %v51
    %v55 = vrot.slane %v54, 4
    %v56 = vadd.f32 %v54, %v55
    %v57 = vrot.slane %v56, 2
    %v58 = vadd.f32 %v56, %v57
    %v59 = vrot.slane %v58, 1
    %v60 = vadd.f32 %v58, %v59
    %61 = vst [vmem:[#allocation7] sm:$0x1] %v60
    // Predicated region
    $region18: #{tpu_custom_call.1} parent=1 // pred_check
      _
    $region19: #{tpu_custom_call.1} parent=1 // pred_check_branch
      %63 = sbr.rel (0) target = $region21
    $region20: #{tpu_custom_call.1} parent=1 // pred_region
      %s65 = ssub.s32 16, 16
      %66 = vsyncadd [#allocation4], %s65
      %s68 = sshll.u32 [#allocation7], 4
      %s69 = int_to_ptr.vmem [resolvable:$true] %s68
      %71 = dma.vmem_to_hbm [thread:$0]  %s69, 16, %s2, [#allocation4]
    $region21: #{tpu_custom_call.1} parent=1 // pred_fallthru
      _
    // Predicated region
    $region22: #{tpu_custom_call.1} parent=1 // pred_check
      _
    $region23: #{tpu_custom_call.1} parent=1 // pred_check_branch
      %73 = sbr.rel (0) target = $region25
    $region24: #{tpu_custom_call.1} parent=1 // pred_region
      %74 = dma.done [#allocation4], 16
    $region25: #{tpu_custom_call.1} parent=1 // pred_fallthru
      _
    %75 = vsyncpa [#allocation3], 1
    %76 = vsyncpa [#allocation6], 1
    %77 = vsyncpa [#allocation4], 1

</llo_original>
